<compile_context>
chip_gen: v5e
topology: v5e:2x2
jax: 0.10.0
libtpu: 0.0.40
codegen_flags: <defaults>
</compile_context>

<pallas_src>
import jax
import jax.numpy as jnp
from jax.experimental import pallas as pl
from jax.experimental.pallas import tpu as pltpu

# ---- model hyper-parameters (small, consistent with the module) -------------
N_STATES = 8
N_ACTIONS = 4
N_HIDDEN = 32                      # n_hidden_filters (scaled down from 256)
N_HIDDEN_LAYERS = 3
NUM_LAYERS = 2 + N_HIDDEN_LAYERS   # input + hiddens + output
ACTION_BOUNDS = (-2.0, 2.0)        # (low, high) = action_bounds[0]/[1]

PAD = 128                          # lane width; hidden/output feature dims padded to this


def _round_up(x, m):
    return (x + m - 1) // m * m


def policy_kernel(x_ref, w0_ref, wr_ref, b_ref, o_ref):
    """x_ref : (TILE_B, N_STATES) f32      w0_ref: (N_STATES, PAD) f32
       wr_ref: (NUM_LAYERS-1, PAD, PAD) bf16   b_ref: (NUM_LAYERS, PAD) f32
       o_ref : (TILE_B, N_ACTIONS) f32

    Zero padding in the weight/bias lanes propagates zeros through every layer
    (0*w + 0 -> relu(0) = 0), so padded lanes never contaminate real outputs.
    """
    x = x_ref[...]                                                 # (TILE_B, 8) f32

    # layer 0: K = n_states (tiny), f32 MXU
    h = jnp.dot(x, w0_ref[...], preferred_element_type=jnp.float32)
    x = jnp.maximum(h + b_ref[0], 0.0)                             # f32 (TILE_B, PAD)

    # hidden layers: bf16 MXU inputs, f32 accumulation / epilogue
    for l in range(N_HIDDEN_LAYERS):
        h = jnp.dot(x.astype(jnp.bfloat16), wr_ref[l],
                    preferred_element_type=jnp.float32)
        x = jnp.maximum(h + b_ref[1 + l], 0.0)

    # output layer: tanh, scale by high bound
    y = jnp.dot(x.astype(jnp.bfloat16), wr_ref[N_HIDDEN_LAYERS],
                preferred_element_type=jnp.float32)
    y = jnp.tanh(y + b_ref[NUM_LAYERS - 1]) * ACTION_BOUNDS[1]
    if ACTION_BOUNDS[0] != -ACTION_BOUNDS[1]:   # clamp only binds for asymmetric bounds
        y = jnp.clip(y, ACTION_BOUNDS[0], ACTION_BOUNDS[1])

    o_ref[...] = y[:, :N_ACTIONS]


def init_params(key):
    """Deterministic PyTorch-Linear-style init: U(-1/sqrt(fan_in), 1/sqrt(fan_in))."""
    ks = jax.random.split(key, 2 + 2 * N_HIDDEN_LAYERS + 2)

    def lin(kw, kb, fan_in, fan_out):
        bound = 1.0 / jnp.sqrt(fan_in)
        w = jax.random.uniform(kw, (fan_in, fan_out), jnp.float32, -bound, bound)
        b = jax.random.uniform(kb, (fan_out,), jnp.float32, -bound, bound)
        return w, b

    w_in, b_in = lin(ks[0], ks[1], N_STATES, N_HIDDEN)
    hidden = []
    for i in range(N_HIDDEN_LAYERS):
        hidden.append(lin(ks[2 + 2 * i], ks[3 + 2 * i], N_HIDDEN, N_HIDDEN))
    w_out, b_out = lin(ks[-2], ks[-1], N_HIDDEN, N_ACTIONS)
    return (w_in, b_in), hidden, (w_out, b_out)


def pack_params(in_layer, hidden_layers, out_layer):
    """w0: (N_STATES, PAD) f32; w_rest: (NUM_LAYERS-1, PAD, PAD) bf16;
       b_stack: (NUM_LAYERS, PAD) f32 — all zero padded."""
    w_in, b_in = in_layer
    w_out, b_out = out_layer

    w0 = jnp.zeros((N_STATES, PAD), jnp.float32).at[:, :N_HIDDEN].set(w_in)

    w_rest = jnp.zeros((NUM_LAYERS - 1, PAD, PAD), jnp.float32)
    b_stack = jnp.zeros((NUM_LAYERS, PAD), jnp.float32)
    b_stack = b_stack.at[0, :N_HIDDEN].set(b_in)
    for i, (w, b) in enumerate(hidden_layers):
        w_rest = w_rest.at[i, :N_HIDDEN, :N_HIDDEN].set(w)
        b_stack = b_stack.at[1 + i, :N_HIDDEN].set(b)
    w_rest = w_rest.at[NUM_LAYERS - 2, :N_HIDDEN, :N_ACTIONS].set(w_out)
    b_stack = b_stack.at[NUM_LAYERS - 1, :N_ACTIONS].set(b_out)

    return w0, w_rest.astype(jnp.bfloat16), b_stack


@jax.jit
def policy_forward(state, w0, w_rest, b_stack):
    B = state.shape[0]
    # At most 2 grid steps, marked "parallel": 1 tile for small batches
    # (v5e/v6e, single TensorCore), 2 tiles for large batches so v7x can put
    # one tile on each TensorCore. Per-step overhead stays negligible.
    if B >= 16:
        tile_b = _round_up(pl.cdiv(B, 2), 8)
        n_tiles = 2
    else:
        tile_b = _round_up(B, 8)
        n_tiles = 1
    b_pad = tile_b * n_tiles

    x = state
    if b_pad != B:
        x = jnp.pad(state, ((0, b_pad - B), (0, 0)))   # rows only: B_pad x 8 f32, tiny

    out = pl.pallas_call(
        policy_kernel,
        out_shape=jax.ShapeDtypeStruct((b_pad, N_ACTIONS), jnp.float32),
        grid=(n_tiles,),
        in_specs=[
            pl.BlockSpec((tile_b, N_STATES), lambda i: (i, 0)),         # activations
            pl.BlockSpec(memory_space=pltpu.MemorySpace.VMEM),          # w0 (resident, no double buffer)
            pl.BlockSpec(memory_space=pltpu.MemorySpace.VMEM),          # hidden/output weights (bf16)
            pl.BlockSpec(memory_space=pltpu.MemorySpace.VMEM),          # biases
        ],
        out_specs=pl.BlockSpec((tile_b, N_ACTIONS), lambda i: (i, 0)),
        compiler_params=pltpu.CompilerParams(
            dimension_semantics=("parallel",)),   # shards the 2 batch tiles across TCs on v7x
    )(x, w0, w_rest, b_stack)

    return out[:B] if b_pad != B else out


def policy_forward_ref(state, in_layer, hidden_layers, out_layer):
    w_in, b_in = in_layer
    w_out, b_out = out_layer
    x = jnp.maximum(state @ w_in + b_in, 0.0)
    for w, b in hidden_layers:
        x = jnp.maximum(x @ w + b, 0.0)
    y = jnp.tanh(x @ w_out + b_out) * ACTION_BOUNDS[1]
    return jnp.clip(y, ACTION_BOUNDS[0], ACTION_BOUNDS[1])


if __name__ == "__main__":
    key = jax.random.PRNGKey(0)
    k_state, k_params = jax.random.split(key)

    BATCH = 8   # small test batch; wrapper also handles large batches (2 parallel tiles)
    state = jax.random.normal(k_state, (BATCH, N_STATES), jnp.float32)

    in_layer, hidden_layers, out_layer = init_params(k_params)
    w0, w_rest, b_stack = pack_params(in_layer, hidden_layers, out_layer)

    out = policy_forward(state, w0, w_rest, b_stack)
    out = jax.block_until_ready(out)

    ref = policy_forward_ref(state, in_layer, hidden_layers, out_layer)
    assert out.shape == (BATCH, N_ACTIONS)
    # bf16 MXU inputs with f32 accumulation -> loose-ish tolerance vs f32 reference
    assert bool(jnp.allclose(out, ref, atol=5e-2, rtol=5e-2))
    print("KERNEL_OK")
</pallas_src>

<mosaic_0001>
module attributes {stable_mosaic.version = 11 : i64} {
  func.func @policy_kernel(%arg0: i32, %arg1: memref<8x8xf32, #tpu.memory_space<vmem>>, %arg2: memref<8x128xf32, #tpu.memory_space<vmem>>, %arg3: memref<4x128x128xbf16, #tpu.memory_space<vmem>>, %arg4: memref<5x128xf32, #tpu.memory_space<vmem>>, %arg5: memref<8x4xf32, #tpu.memory_space<vmem>>) attributes {dimension_semantics = [#tpu.dimension_semantics<parallel>], iteration_bounds = array<i64: 1>, scalar_prefetch = 0 : i64, scratch_operands = 0 : i64, tpu.core_type = #tpu.core_type<tc>, window_params = [{transform_indices = @transform_0, window_bounds = array<i64: 8, 8>}, {pipeline_mode = #tpu.pipeline_mode<synchronous>, transform_indices = @transform_1, window_bounds = array<i64: 8, 128>}, {pipeline_mode = #tpu.pipeline_mode<synchronous>, transform_indices = @transform_2, window_bounds = array<i64: 4, 128, 128>}, {pipeline_mode = #tpu.pipeline_mode<synchronous>, transform_indices = @transform_3, window_bounds = array<i64: 5, 128>}, {transform_indices = @transform_4, window_bounds = array<i64: 8, 4>}]} {
    %c0 = arith.constant 0 : index
    %c0_0 = arith.constant 0 : index
    %0 = vector.load %arg1[%c0, %c0_0] : memref<8x8xf32, #tpu.memory_space<vmem>>, vector<8x8xf32>
    %c0_1 = arith.constant 0 : index
    %c0_2 = arith.constant 0 : index
    %1 = vector.load %arg2[%c0_1, %c0_2] : memref<8x128xf32, #tpu.memory_space<vmem>>, vector<8x128xf32>
    %cst = arith.constant dense<0.000000e+00> : vector<8x128xf32>
    %2 = tpu.matmul %0, %1, %cst {dimension_numbers = #tpu.dot_dimension_numbers<[1], [0], [0], [1], [0, 0, 1, 1], [], []>} : vector<8x8xf32>, vector<8x128xf32>, vector<8x128xf32> -> vector<8x128xf32>
    %c0_3 = arith.constant 0 : index
    %c0_4 = arith.constant 0 : index
    %3 = vector.load %arg4[%c0_3, %c0_4] : memref<5x128xf32, #tpu.memory_space<vmem>>, vector<1x128xf32>
    %4 = vector.shape_cast %3 : vector<1x128xf32> to vector<128xf32>
    %5 = vector.shape_cast %4 : vector<128xf32> to vector<1x128xf32>
    %6 = vector.broadcast %5 : vector<1x128xf32> to vector<8x128xf32>
    %7 = arith.addf %2, %6 : vector<8x128xf32>
    %cst_5 = arith.constant 0.000000e+00 : f32
    %8 = vector.broadcast %cst_5 : f32 to vector<8x128xf32>
    %9 = arith.maximumf %7, %8 : vector<8x128xf32>
    %10 = arith.truncf %9 : vector<8x128xf32> to vector<8x128xbf16>
    %c0_6 = arith.constant 0 : index
    %c0_7 = arith.constant 0 : index
    %c0_8 = arith.constant 0 : index
    %11 = vector.load %arg3[%c0_6, %c0_7, %c0_8] : memref<4x128x128xbf16, #tpu.memory_space<vmem>>, vector<1x128x128xbf16>
    %12 = vector.shape_cast %11 : vector<1x128x128xbf16> to vector<128x128xbf16>
    %cst_9 = arith.constant dense<0.000000e+00> : vector<8x128xf32>
    %13 = tpu.matmul %10, %12, %cst_9 {dimension_numbers = #tpu.dot_dimension_numbers<[1], [0], [0], [1], [0, 0, 1, 1], [], []>} : vector<8x128xbf16>, vector<128x128xbf16>, vector<8x128xf32> -> vector<8x128xf32>
    %c1 = arith.constant 1 : index
    %c0_10 = arith.constant 0 : index
    %14 = vector.load %arg4[%c1, %c0_10] : memref<5x128xf32, #tpu.memory_space<vmem>>, vector<1x128xf32>
    %15 = vector.shape_cast %14 : vector<1x128xf32> to vector<128xf32>
    %16 = vector.shape_cast %15 : vector<128xf32> to vector<1x128xf32>
    %17 = vector.broadcast %16 : vector<1x128xf32> to vector<8x128xf32>
    %18 = arith.addf %13, %17 : vector<8x128xf32>
    %cst_11 = arith.constant 0.000000e+00 : f32
    %19 = vector.broadcast %cst_11 : f32 to vector<8x128xf32>
    %20 = arith.maximumf %18, %19 : vector<8x128xf32>
    %21 = arith.truncf %20 : vector<8x128xf32> to vector<8x128xbf16>
    %c1_12 = arith.constant 1 : index
    %c0_13 = arith.constant 0 : index
    %c0_14 = arith.constant 0 : index
    %22 = vector.load %arg3[%c1_12, %c0_13, %c0_14] : memref<4x128x128xbf16, #tpu.memory_space<vmem>>, vector<1x128x128xbf16>
    %23 = vector.shape_cast %22 : vector<1x128x128xbf16> to vector<128x128xbf16>
    %cst_15 = arith.constant dense<0.000000e+00> : vector<8x128xf32>
    %24 = tpu.matmul %21, %23, %cst_15 {dimension_numbers = #tpu.dot_dimension_numbers<[1], [0], [0], [1], [0, 0, 1, 1], [], []>} : vector<8x128xbf16>, vector<128x128xbf16>, vector<8x128xf32> -> vector<8x128xf32>
    %c2 = arith.constant 2 : index
    %c0_16 = arith.constant 0 : index
    %25 = vector.load %arg4[%c2, %c0_16] : memref<5x128xf32, #tpu.memory_space<vmem>>, vector<1x128xf32>
    %26 = vector.shape_cast %25 : vector<1x128xf32> to vector<128xf32>
    %27 = vector.shape_cast %26 : vector<128xf32> to vector<1x128xf32>
    %28 = vector.broadcast %27 : vector<1x128xf32> to vector<8x128xf32>
    %29 = arith.addf %24, %28 : vector<8x128xf32>
    %cst_17 = arith.constant 0.000000e+00 : f32
    %30 = vector.broadcast %cst_17 : f32 to vector<8x128xf32>
    %31 = arith.maximumf %29, %30 : vector<8x128xf32>
    %32 = arith.truncf %31 : vector<8x128xf32> to vector<8x128xbf16>
    %c2_18 = arith.constant 2 : index
    %c0_19 = arith.constant 0 : index
    %c0_20 = arith.constant 0 : index
    %33 = vector.load %arg3[%c2_18, %c0_19, %c0_20] : memref<4x128x128xbf16, #tpu.memory_space<vmem>>, vector<1x128x128xbf16>
    %34 = vector.shape_cast %33 : vector<1x128x128xbf16> to vector<128x128xbf16>
    %cst_21 = arith.constant dense<0.000000e+00> : vector<8x128xf32>
    %35 = tpu.matmul %32, %34, %cst_21 {dimension_numbers = #tpu.dot_dimension_numbers<[1], [0], [0], [1], [0, 0, 1, 1], [], []>} : vector<8x128xbf16>, vector<128x128xbf16>, vector<8x128xf32> -> vector<8x128xf32>
    %c3 = arith.constant 3 : index
    %c0_22 = arith.constant 0 : index
    %36 = vector.load %arg4[%c3, %c0_22] : memref<5x128xf32, #tpu.memory_space<vmem>>, vector<1x128xf32>
    %37 = vector.shape_cast %36 : vector<1x128xf32> to vector<128xf32>
    %38 = vector.shape_cast %37 : vector<128xf32> to vector<1x128xf32>
    %39 = vector.broadcast %38 : vector<1x128xf32> to vector<8x128xf32>
    %40 = arith.addf %35, %39 : vector<8x128xf32>
    %cst_23 = arith.constant 0.000000e+00 : f32
    %41 = vector.broadcast %cst_23 : f32 to vector<8x128xf32>
    %42 = arith.maximumf %40, %41 : vector<8x128xf32>
    %43 = arith.truncf %42 : vector<8x128xf32> to vector<8x128xbf16>
    %c3_24 = arith.constant 3 : index
    %c0_25 = arith.constant 0 : index
    %c0_26 = arith.constant 0 : index
    %44 = vector.load %arg3[%c3_24, %c0_25, %c0_26] : memref<4x128x128xbf16, #tpu.memory_space<vmem>>, vector<1x128x128xbf16>
    %45 = vector.shape_cast %44 : vector<1x128x128xbf16> to vector<128x128xbf16>
    %cst_27 = arith.constant dense<0.000000e+00> : vector<8x128xf32>
    %46 = tpu.matmul %43, %45, %cst_27 {dimension_numbers = #tpu.dot_dimension_numbers<[1], [0], [0], [1], [0, 0, 1, 1], [], []>} : vector<8x128xbf16>, vector<128x128xbf16>, vector<8x128xf32> -> vector<8x128xf32>
    %c4 = arith.constant 4 : index
    %c0_28 = arith.constant 0 : index
    %47 = vector.load %arg4[%c4, %c0_28] : memref<5x128xf32, #tpu.memory_space<vmem>>, vector<1x128xf32>
    %48 = vector.shape_cast %47 : vector<1x128xf32> to vector<128xf32>
    %49 = vector.shape_cast %48 : vector<128xf32> to vector<1x128xf32>
    %50 = vector.broadcast %49 : vector<1x128xf32> to vector<8x128xf32>
    %51 = arith.addf %46, %50 : vector<8x128xf32>
    %52 = math.tanh %51 : vector<8x128xf32>
    %cst_29 = arith.constant 2.000000e+00 : f32
    %53 = vector.broadcast %cst_29 : f32 to vector<8x128xf32>
    %54 = arith.mulf %52, %53 : vector<8x128xf32>
    %55 = vector.extract_strided_slice %54 {offsets = [0, 0], sizes = [8, 4], strides = [1, 1]} : vector<8x128xf32> to vector<8x4xf32>
    %c0_30 = arith.constant 0 : index
    %c0_31 = arith.constant 0 : index
    %56 = vector.load %arg5[%c0_30, %c0_31] : memref<8x4xf32, #tpu.memory_space<vmem>>, vector<8x4xf32>
    tpu.vector_store %arg5[%c0_30, %c0_31], %55 {strides = array<i32>} : memref<8x4xf32, #tpu.memory_space<vmem>>, vector<8x4xf32>,
    return
  }
  func.func @transform_0(%arg0: i32) -> (i32, i32) {
    %c0_i32 = arith.constant 0 : i32
    %c0_i32_0 = arith.constant 0 : i32
    return %arg0, %c0_i32 : i32, i32
  }
  func.func @transform_1(%arg0: i32) -> (i32, i32) {
    %c0_i32 = arith.constant 0 : i32
    %c0_i32_0 = arith.constant 0 : i32
    %c0_i32_1 = arith.constant 0 : i32
    return %c0_i32, %c0_i32_0 : i32, i32
  }
  func.func @transform_2(%arg0: i32) -> (i32, i32, i32) {
    %c0_i32 = arith.constant 0 : i32
    %c0_i32_0 = arith.constant 0 : i32
    %c0_i32_1 = arith.constant 0 : i32
    %c0_i32_2 = arith.constant 0 : i32
    return %c0_i32, %c0_i32_0, %c0_i32_1 : i32, i32, i32
  }
  func.func @transform_3(%arg0: i32) -> (i32, i32) {
    %c0_i32 = arith.constant 0 : i32
    %c0_i32_0 = arith.constant 0 : i32
    %c0_i32_1 = arith.constant 0 : i32
    return %c0_i32, %c0_i32_0 : i32, i32
  }
  func.func @transform_4(%arg0: i32) -> (i32, i32) {
    %c0_i32 = arith.constant 0 : i32
    %c0_i32_0 = arith.constant 0 : i32
    return %arg0, %c0_i32 : i32, i32
  }
}

</mosaic_0001>

<llo_original>
// kernel: policy_forward.1
$region0: #{policy_forward.1}
  #allocation0 [shape = 'u32[]', space=smem, size = 0x4, offset = 0x4, fixed_abs, tag = 'smem constant byte address 0x4 - core index']
  #allocation1 [shape = 'u32[72,128]{1,0:T(1,128)}', space=vmem, size = 0x9000, scoped, tag = 'internal scratch']
  %s0 = inlined_call_operand.hbm [shape: f32[8,8], index: 0, kind: input, shape index: {}]
  %s1 = inlined_call_operand.hbm [shape: f32[8,128], index: 1, kind: input, shape index: {}]
  %s2 = inlined_call_operand.hbm [shape: bf16[4,128,128], index: 2, kind: input, shape index: {}]
  %s3 = inlined_call_operand.hbm [shape: f32[5,128], index: 3, kind: input, shape index: {}]
  %s4 = inlined_call_operand.vmem [shape: f32[8,4], index: 4, kind: output, shape index: {}]
  %s5 = sld [smem:[#allocation0]]
  $region42: #{policy_forward.1} parent=0
    _
  %s7 = ssub.s32 1, %s5
  %s8 = scalar_select 0, %s7, %s5
  $region1: #{policy_forward.1} parent=0
    #allocation2 [shape = 'u8[4096]{0}', space=vmem, size = 0x1000, scoped, tag = 'input window, operand 0, single buffered']
    #allocation3 [shape = 's32[1]{0}', space=sflag, size = 0x4, scoped, tag = 'scoped memory for policy_forward.1']
    #allocation4 [shape = 'u8[4096]{0}', space=vmem, size = 0x1000, scoped, tag = 'input window, operand 1, single buffered']
    #allocation5 [shape = 's32[1]{0}', space=sflag, size = 0x4, scoped, tag = 'scoped memory for policy_forward.1']
    #allocation6 [shape = 'u8[131072]{0}', space=vmem, size = 0x20000, scoped, tag = 'input window, operand 2, single buffered']
    #allocation7 [shape = 'u8[4096]{0}', space=vmem, size = 0x1000, scoped, tag = 'input window, operand 3, single buffered']
    #allocation8 [shape = 's32[1]{0}', space=sflag, size = 0x4, scoped, tag = 'scoped memory for policy_forward.1']
    %9 = vsyncpa [#allocation3], 0
    %10 = vsyncpa [#allocation5], 0
    %11 = vsyncpa [#allocation8], 0
    // Predicated region
    $region2: #{policy_forward.1} parent=1 // pred_check
      _
    $region3: #{policy_forward.1} parent=1 // pred_check_branch
      %13 = sbr.rel (0) target = $region5
    $region4: #{policy_forward.1} parent=1 // pred_region
      %15 = vsyncadd [#allocation3], 0
      %s17 = sshll.u32 %s0, 4
      %s18 = int_to_ptr.hbm [resolvable:$true] %s17
      %s19 = sshll.u32 [#allocation2], 4
      %s20 = int_to_ptr.vmem [resolvable:$true] %s19
      %22 = dma.hbm_to_vmem [thread:$0]  %s18, 128, %s20, [#allocation3]
    $region5: #{policy_forward.1} parent=1 // pred_fallthru
      _
    // Predicated region
    $region6: #{policy_forward.1} parent=1 // pred_check
      _
    $region7: #{policy_forward.1} parent=1 // pred_check_branch
      %24 = sbr.rel (0) target = $region9
    $region8: #{policy_forward.1} parent=1 // pred_region
      %26 = vsyncadd [#allocation5], 0
      %s28 = sshll.u32 %s1, 4
      %s29 = int_to_ptr.hbm [resolvable:$true] %s28
      %s30 = sshll.u32 [#allocation4], 4
      %s31 = int_to_ptr.vmem [resolvable:$true] %s30
      %33 = dma.hbm_to_vmem [thread:$0]  %s29, 128, %s31, [#allocation5]
    $region9: #{policy_forward.1} parent=1 // pred_fallthru
      _
    // Predicated region
    $region10: #{policy_forward.1} parent=1 // pred_check
      _
    $region11: #{policy_forward.1} parent=1 // pred_check_branch
      %35 = sbr.rel (0) target = $region13
    $region12: #{policy_forward.1} parent=1 // pred_region
      %37 = vsyncadd [#allocation5], 0
      %s38 = sshll.u32 %s2, 4
      %s39 = int_to_ptr.hbm [resolvable:$true] %s38
      %s40 = sshll.u32 [#allocation6], 4
      %s41 = int_to_ptr.vmem [resolvable:$true] %s40
      %46 = dma.hbm_to_vmem [thread:$0]  %s39, 4096, %s41, [#allocation5], 64, 64, 4
    $region13: #{policy_forward.1} parent=1 // pred_fallthru
      _
    // Predicated region
    $region14: #{policy_forward.1} parent=1 // pred_check
      _
    $region15: #{policy_forward.1} parent=1 // pred_check_branch
      %48 = sbr.rel (0) target = $region17
    $region16: #{policy_forward.1} parent=1 // pred_region
      %50 = vsyncadd [#allocation8], 0
      %s52 = sshll.u32 %s3, 4
      %s53 = int_to_ptr.hbm [resolvable:$true] %s52
      %s54 = sshll.u32 [#allocation7], 4
      %s55 = int_to_ptr.vmem [resolvable:$true] %s54
      %57 = dma.hbm_to_vmem [thread:$0]  %s53, 128, %s55, [#allocation8]
    $region17: #{policy_forward.1} parent=1 // pred_fallthru
      _
    // Predicated region
    $region18: #{policy_forward.1} parent=1 // pred_check
      _
    $region19: #{policy_forward.1} parent=1 // pred_check_branch
      %59 = sbr.rel (0) target = $region21
    $region20: #{policy_forward.1} parent=1 // pred_region
      %61 = dma.done [#allocation3], 128
    $region21: #{policy_forward.1} parent=1 // pred_fallthru
      _
    // Predicated region
    $region22: #{policy_forward.1} parent=1 // pred_check
      _
    $region23: #{policy_forward.1} parent=1 // pred_check_branch
      %63 = sbr.rel (0) target = $region25
    $region24: #{policy_forward.1} parent=1 // pred_region
      %65 = dma.done [#allocation5], 128
    $region25: #{policy_forward.1} parent=1 // pred_fallthru
      _
    // Predicated region
    $region26: #{policy_forward.1} parent=1 // pred_check
      _
    $region27: #{policy_forward.1} parent=1 // pred_check_branch
      %67 = sbr.rel (0) target = $region29
    $region28: #{policy_forward.1} parent=1 // pred_region
      %69 = dma.done [#allocation5], 4096
    $region29: #{policy_forward.1} parent=1 // pred_fallthru
      _
    // Predicated region
    $region30: #{policy_forward.1} parent=1 // pred_check
      _
    $region31: #{policy_forward.1} parent=1 // pred_check_branch
      %71 = sbr.rel (0) target = $region33
    $region32: #{policy_forward.1} parent=1 // pred_region
      %73 = dma.done [#allocation8], 128
    $region33: #{policy_forward.1} parent=1 // pred_fallthru
      _
    %v74 = vld [vmem:[#allocation2] sm:$0xff]
    %v75 = vld [vmem:[#allocation4] sm:$0xff]
    %v76 = vld [vmem:[#allocation7] sm:$0x1]
    %v77 = vperm.slane %v76, 0
    %vm78 = vcmask 64512
    %v80 = vsel %vm78, %v74, 0
    %82 = vmatpush.msra.mxu0 0.0
    %83 = vmatpush.msra.mxu0 0.0
    %84 = vmatpush.msra.mxu0 0.0
    %85 = vmatpush.msra.mxu0 0.0
    %86 = vmatpush.msra.mxu0 0.0
    %87 = vmatpush.msra.mxu0 0.0
    %88 = vmatpush.msra.mxu0 0.0
    %89 = vmatpush.msra.mxu0 0.0
    %90 = vmatpush.msra.mxu0 0.0
    %91 = vmatpush.msra.mxu0 0.0
    %92 = vmatpush.msra.mxu0 0.0
    %93 = vmatpush.msra.mxu0 0.0
    %94 = vmatpush.msra.mxu0 0.0
    %95 = vmatpush.msra.mxu0 0.0
    %96 = vmatpush.msra.mxu0 0.0
    %97 = vmatpush.msra.mxu0 %v75
    %98 = vmatmul.f32.gmra.mxu0 %v80
    %v99 = vpop.f32.mrf.mxu0
    %v100 = vadd.f32 %v77, %v99
    %101 = vdwg.mxu0
    %v102 = vmax.f32 %v100, 0.0
    %v103 = vpack.c.bf16 %v102, %v102
    %v104 = vld [vmem:[#allocation6] sm:$0xf]
    %v105 = vld [vmem:[#allocation6 + $0x4] sm:$0xf]
    %v106 = vld [vmem:[#allocation6 + $0x8] sm:$0xf]
    %v107 = vld [vmem:[#allocation6 + $0xc] sm:$0xf]
    %v108 = vld [vmem:[#allocation6 + $0x10] sm:$0xf]
    %v109 = vld [vmem:[#allocation6 + $0x14] sm:$0xf]
    %v110 = vld [vmem:[#allocation6 + $0x18] sm:$0xf]
    %v111 = vld [vmem:[#allocation6 + $0x1c] sm:$0xf]
    %v112 = vld [vmem:[#allocation6 + $0x20] sm:$0xf]
    %v113 = vld [vmem:[#allocation6 + $0x24] sm:$0xf]
    %v114 = vld [vmem:[#allocation6 + $0x28] sm:$0xf]
    %v115 = vld [vmem:[#allocation6 + $0x2c] sm:$0xf]
    %v116 = vld [vmem:[#allocation6 + $0x30] sm:$0xf]
    %v117 = vld [vmem:[#allocation6 + $0x34] sm:$0xf]
    %v118 = vld [vmem:[#allocation6 + $0x38] sm:$0xf]
    %v119 = vld [vmem:[#allocation6 + $0x3c] sm:$0xf]
    %v120 = vld [vmem:[#allocation7 + $0x1] sm:$0x1]
    %v121 = vperm.slane %v120, 0
    %v138 = vunpack.c.l.b16 %v104
    %v139 = vunpack.c.l.b16 %v105
    %v140 = vunpack.c.l.b16 %v106
    %v141 = vunpack.c.l.b16 %v107
    %v142 = vunpack.c.l.b16 %v108
    %v143 = vunpack.c.l.b16 %v109
    %v144 = vunpack.c.l.b16 %v110
    %v145 = vunpack.c.l.b16 %v111
    %v146 = vunpack.c.l.b16 %v112
    %v147 = vunpack.c.l.b16 %v113
    %v148 = vunpack.c.l.b16 %v114
    %v149 = vunpack.c.l.b16 %v115
    %v150 = vunpack.c.l.b16 %v116
    %v151 = vunpack.c.l.b16 %v117
    %v152 = vunpack.c.l.b16 %v118
    %v153 = vunpack.c.l.b16 %v119
    %v154 = vpack.c.b16 %v139, %v138
    %v155 = vpack.c.b16 %v141, %v140
    %v156 = vpack.c.b16 %v143, %v142
    %v157 = vpack.c.b16 %v145, %v144
    %v158 = vpack.c.b16 %v147, %v146
    %v159 = vpack.c.b16 %v149, %v148
    %v160 = vpack.c.b16 %v151, %v150
    %v161 = vpack.c.b16 %v153, %v152
    %170 = vmatpush.bf16.msra.mxu0 %v161
    %171 = vmatpush.bf16.msra.mxu0 %v160
    %172 = vmatpush.bf16.msra.mxu0 %v159
    %173 = vmatpush.bf16.msra.mxu0 %v158
    %174 = vmatpush.bf16.msra.mxu0 %v157
    %175 = vmatpush.bf16.msra.mxu0 %v156
    %176 = vmatpush.bf16.msra.mxu0 %v155
    %177 = vmatpush.bf16.msra.mxu0 %v154
    %178 = vmatmul.bf16.gmra.mxu0 %v103
    %v179 = vpop.f32.mrf.mxu0
    %v180 = vadd.f32 %v121, %v179
    %v181 = vpop.f32.mrf.mxu0
    %182 = vdwg.mxu0
    %v183 = vmax.f32 %v180, 0.0
    %v184 = vpack.c.bf16 %v183, %v183
    %s185 = scalar_lea.vmem [#allocation6], 64
    %v186 = vld [vmem:[%s185] sm:$0xf]
    %v187 = vld [vmem:[%s185 + $0x4] sm:$0xf]
    %v188 = vld [vmem:[%s185 + $0x8] sm:$0xf]
    %v189 = vld [vmem:[%s185 + $0xc] sm:$0xf]
    %v190 = vld [vmem:[%s185 + $0x10] sm:$0xf]
    %v191 = vld [vmem:[%s185 + $0x14] sm:$0xf]
    %v192 = vld [vmem:[%s185 + $0x18] sm:$0xf]
    %v193 = vld [vmem:[%s185 + $0x1c] sm:$0xf]
    %v194 = vld [vmem:[%s185 + $0x20] sm:$0xf]
    %v195 = vld [vmem:[%s185 + $0x24] sm:$0xf]
    %v196 = vld [vmem:[%s185 + $0x28] sm:$0xf]
    %v197 = vld [vmem:[%s185 + $0x2c] sm:$0xf]
    %v198 = vld [vmem:[%s185 + $0x30] sm:$0xf]
    %v199 = vld [vmem:[%s185 + $0x34] sm:$0xf]
    %v200 = vld [vmem:[%s185 + $0x38] sm:$0xf]
    %v201 = vld [vmem:[%s185 + $0x3c] sm:$0xf]
    %v202 = vld [vmem:[#allocation7 + $0x2] sm:$0x1]
    %v203 = vperm.slane %v202, 0
    %v220 = vunpack.c.l.b16 %v186
    %v221 = vunpack.c.l.b16 %v187
    %v222 = vunpack.c.l.b16 %v188
    %v223 = vunpack.c.l.b16 %v189
    %v224 = vunpack.c.l.b16 %v190
    %v225 = vunpack.c.l.b16 %v191
    %v226 = vunpack.c.l.b16 %v192
    %v227 = vunpack.c.l.b16 %v193
    %v228 = vunpack.c.l.b16 %v194
    %v229 = vunpack.c.l.b16 %v195
    %v230 = vunpack.c.l.b16 %v196
    %v231 = vunpack.c.l.b16 %v197
    %v232 = vunpack.c.l.b16 %v198
    %v233 = vunpack.c.l.b16 %v199
    %v234 = vunpack.c.l.b16 %v200
    %v235 = vunpack.c.l.b16 %v201
    %v236 = vpack.c.b16 %v221, %v220
    %v237 = vpack.c.b16 %v223, %v222
    %v238 = vpack.c.b16 %v225, %v224
    %v239 = vpack.c.b16 %v227, %v226
    %v240 = vpack.c.b16 %v229, %v228
    %v241 = vpack.c.b16 %v231, %v230
    %v242 = vpack.c.b16 %v233, %v232
    %v243 = vpack.c.b16 %v235, %v234
    %252 = vmatpush.bf16.msra.mxu0 %v243
    %253 = vmatpush.bf16.msra.mxu0 %v242
    %254 = vmatpush.bf16.msra.mxu0 %v241
    %255 = vmatpush.bf16.msra.mxu0 %v240
    %256 = vmatpush.bf16.msra.mxu0 %v239
    %257 = vmatpush.bf16.msra.mxu0 %v238
    %258 = vmatpush.bf16.msra.mxu0 %v237
    %259 = vmatpush.bf16.msra.mxu0 %v236
    %260 = vmatmul.bf16.gmra.mxu0 %v184
    %v261 = vpop.f32.mrf.mxu0
    %v262 = vadd.f32 %v203, %v261
    %v263 = vpop.f32.mrf.mxu0
    %264 = vdwg.mxu0
    %v265 = vmax.f32 %v262, 0.0
    %v266 = vpack.c.bf16 %v265, %v265
    %s267 = scalar_lea.vmem [#allocation6], 128
    %v268 = vld [vmem:[%s267] sm:$0xf]
    %v269 = vld [vmem:[%s267 + $0x4] sm:$0xf]
    %v270 = vld [vmem:[%s267 + $0x8] sm:$0xf]
    %v271 = vld [vmem:[%s267 + $0xc] sm:$0xf]
    %v272 = vld [vmem:[%s267 + $0x10] sm:$0xf]
    %v273 = vld [vmem:[%s267 + $0x14] sm:$0xf]
    %v274 = vld [vmem:[%s267 + $0x18] sm:$0xf]
    %v275 = vld [vmem:[%s267 + $0x1c] sm:$0xf]
    %v276 = vld [vmem:[%s267 + $0x20] sm:$0xf]
    %v277 = vld [vmem:[%s267 + $0x24] sm:$0xf]
    %v278 = vld [vmem:[%s267 + $0x28] sm:$0xf]
    %v279 = vld [vmem:[%s267 + $0x2c] sm:$0xf]
    %v280 = vld [vmem:[%s267 + $0x30] sm:$0xf]
    %v281 = vld [vmem:[%s267 + $0x34] sm:$0xf]
    %v282 = vld [vmem:[%s267 + $0x38] sm:$0xf]
    %v283 = vld [vmem:[%s267 + $0x3c] sm:$0xf]
    %v284 = vld [vmem:[#allocation7 + $0x3] sm:$0x1]
    %v285 = vperm.slane %v284, 0
    %v302 = vunpack.c.l.b16 %v268
    %v303 = vunpack.c.l.b16 %v269
    %v304 = vunpack.c.l.b16 %v270
    %v305 = vunpack.c.l.b16 %v271
    %v306 = vunpack.c.l.b16 %v272
    %v307 = vunpack.c.l.b16 %v273
    %v308 = vunpack.c.l.b16 %v274
    %v309 = vunpack.c.l.b16 %v275
    %v310 = vunpack.c.l.b16 %v276
    %v311 = vunpack.c.l.b16 %v277
    %v312 = vunpack.c.l.b16 %v278
    %v313 = vunpack.c.l.b16 %v279
    %v314 = vunpack.c.l.b16 %v280
    %v315 = vunpack.c.l.b16 %v281
    %v316 = vunpack.c.l.b16 %v282
    %v317 = vunpack.c.l.b16 %v283
    %v318 = vpack.c.b16 %v303, %v302
    %v319 = vpack.c.b16 %v305, %v304
    %v320 = vpack.c.b16 %v307, %v306
    %v321 = vpack.c.b16 %v309, %v308
    %v322 = vpack.c.b16 %v311, %v310
    %v323 = vpack.c.b16 %v313, %v312
    %v324 = vpack.c.b16 %v315, %v314
    %v325 = vpack.c.b16 %v317, %v316
    %334 = vmatpush.bf16.msra.mxu0 %v325
    %335 = vmatpush.bf16.msra.mxu0 %v324
    %336 = vmatpush.bf16.msra.mxu0 %v323
    %337 = vmatpush.bf16.msra.mxu0 %v322
    %338 = vmatpush.bf16.msra.mxu0 %v321
    %339 = vmatpush.bf16.msra.mxu0 %v320
    %340 = vmatpush.bf16.msra.mxu0 %v319
    %341 = vmatpush.bf16.msra.mxu0 %v318
    %342 = vmatmul.bf16.gmra.mxu0 %v266
    %v343 = vpop.f32.mrf.mxu0
    %v344 = vadd.f32 %v285, %v343
    %v345 = vpop.f32.mrf.mxu0
    %346 = vdwg.mxu0
    %v347 = vmax.f32 %v344, 0.0
    %v348 = vpack.c.bf16 %v347, %v347
    %s349 = scalar_lea.vmem [#allocation6], 192
    %v350 = vld [vmem:[%s349] sm:$0xf]
    %v351 = vld [vmem:[%s349 + $0x4] sm:$0xf]
    %v352 = vld [vmem:[%s349 + $0x8] sm:$0xf]
    %v353 = vld [vmem:[%s349 + $0xc] sm:$0xf]
    %v354 = vld [vmem:[%s349 + $0x10] sm:$0xf]
    %v355 = vld [vmem:[%s349 + $0x14] sm:$0xf]
    %v356 = vld [vmem:[%s349 + $0x18] sm:$0xf]
    %v357 = vld [vmem:[%s349 + $0x1c] sm:$0xf]
    %v358 = vld [vmem:[%s349 + $0x20] sm:$0xf]
    %v359 = vld [vmem:[%s349 + $0x24] sm:$0xf]
    %v360 = vld [vmem:[%s349 + $0x28] sm:$0xf]
    %v361 = vld [vmem:[%s349 + $0x2c] sm:$0xf]
    %v362 = vld [vmem:[%s349 + $0x30] sm:$0xf]
    %v363 = vld [vmem:[%s349 + $0x34] sm:$0xf]
    %v364 = vld [vmem:[%s349 + $0x38] sm:$0xf]
    %v365 = vld [vmem:[%s349 + $0x3c] sm:$0xf]
    %v366 = vld [vmem:[#allocation7 + $0x4] sm:$0x1]
    %v367 = vperm.slane %v366, 0
    %v384 = vunpack.c.l.b16 %v350
    %v385 = vunpack.c.l.b16 %v351
    %v386 = vunpack.c.l.b16 %v352
    %v387 = vunpack.c.l.b16 %v353
    %v388 = vunpack.c.l.b16 %v354
    %v389 = vunpack.c.l.b16 %v355
    %v390 = vunpack.c.l.b16 %v356
    %v391 = vunpack.c.l.b16 %v357
    %v392 = vunpack.c.l.b16 %v358
    %v393 = vunpack.c.l.b16 %v359
    %v394 = vunpack.c.l.b16 %v360
    %v395 = vunpack.c.l.b16 %v361
    %v396 = vunpack.c.l.b16 %v362
    %v397 = vunpack.c.l.b16 %v363
    %v398 = vunpack.c.l.b16 %v364
    %v399 = vunpack.c.l.b16 %v365
    %v400 = vpack.c.b16 %v385, %v384
    %v401 = vpack.c.b16 %v387, %v386
    %v402 = vpack.c.b16 %v389, %v388
    %v403 = vpack.c.b16 %v391, %v390
    %v404 = vpack.c.b16 %v393, %v392
    %v405 = vpack.c.b16 %v395, %v394
    %v406 = vpack.c.b16 %v397, %v396
    %v407 = vpack.c.b16 %v399, %v398
    %416 = vmatpush.bf16.msra.mxu0 %v407
    %417 = vmatpush.bf16.msra.mxu0 %v406
    %418 = vmatpush.bf16.msra.mxu0 %v405
    %419 = vmatpush.bf16.msra.mxu0 %v404
    %420 = vmatpush.bf16.msra.mxu0 %v403
    %421 = vmatpush.bf16.msra.mxu0 %v402
    %422 = vmatpush.bf16.msra.mxu0 %v401
    %423 = vmatpush.bf16.msra.mxu0 %v400
    %424 = vmatmul.bf16.gmra.mxu0 %v348
    %v425 = vpop.f32.mrf.mxu0
    %v426 = vadd.f32 %v367, %v425
    %v427 = vpop.f32.mrf.mxu0
    %428 = vdwg.mxu0
    %v429 = vtanh.pop %v426
    %v430 = vmul.f32 %v429, 2.0
    %vm431 = vcmask 31744
    %432 = vst.msk [vmem:[%s4] sm:$0xff] %vm431, %v430
    // Predicated region
    $region34: #{policy_forward.1} parent=1 // pred_check
      _
    $region35: #{policy_forward.1} parent=1 // pred_check_branch
      %434 = sbr.rel (0) target = $region37
    $region36: #{policy_forward.1} parent=1 // pred_region
      _
    $region37: #{policy_forward.1} parent=1 // pred_fallthru
      _
    // Predicated region
    $region38: #{policy_forward.1} parent=1 // pred_check
      _
    $region39: #{policy_forward.1} parent=1 // pred_check_branch
      %436 = sbr.rel (0) target = $region41
    $region40: #{policy_forward.1} parent=1 // pred_region
      _
    $region41: #{policy_forward.1} parent=1 // pred_fallthru
      _
    %437 = vsyncpa [#allocation3], 1
    %438 = vsyncpa [#allocation5], 1
    %439 = vsyncpa [#allocation8], 1

</llo_original>
